<compile_context>
chip_gen: v7x
topology: tpu7x:2x2x1
jax: 0.10.0
libtpu: 0.0.40
codegen_flags: <defaults>
</compile_context>

<pallas_src>
import math
import functools

import jax
import jax.numpy as jnp
from jax.experimental import pallas as pl
from jax.experimental.pallas import tpu as pltpu


def _cbam3d_kernel(x_ref, w1_ref, w2_ref, wsp_ref, o_ref, sum_sc, max_sc,
                   *, ts, n_chunks, ragged, s_total, c_total, bn_scale, unroll):
    """Grid = (B, num_s_tiles); spatial-reduction axis last ("arbitrary").

    x_ref  : (1, C, ts)  VMEM tile of x in natural (B, C, S) layout (S on lanes)
    w1_ref : (Hp, C)     first 1x1x1 conv weight, hidden dim zero-padded to Hp
    w2_ref : (C, Hp)     second 1x1x1 conv weight, hidden dim zero-padded to Hp
    wsp_ref: (2,)        SMEM scalars: center taps of the 7x7x7 spatial conv (max, mean)
    o_ref  : (1, C, 1)   per-batch output gate column
    sum_sc : (C, 128)    per-lane partial spatial sums (VMEM scratch)
    max_sc : (C, 128)    per-lane partial spatial maxes (VMEM scratch)
    """
    s = pl.program_id(1)
    last = pl.num_programs(1) - 1

    @pl.when(s == 0)
    def _():
        sum_sc[...] = jnp.zeros_like(sum_sc)
        max_sc[...] = jnp.full_like(max_sc, -jnp.inf)

    def accumulate(masked):
        # Only the masked (last ragged tile) path needs these; keep them out of the
        # steady-state body so the hot loop stays pure loads + adds/maxes.
        if masked:
            rem = s_total - s * ts           # valid lanes remaining in this tile
            lane = jax.lax.broadcasted_iota(jnp.int32, (c_total, 128), 1)

        def chunk(k, ps, pm, static):
            if static:
                blk = x_ref[0, :, k * 128:(k + 1) * 128]                 # (C, 128)
            else:
                off = pl.multiple_of(k * 128, 128)
                blk = x_ref[0, :, pl.ds(off, 128)]                       # (C, 128)
            if masked:
                # NOTE: select (jnp.where) is required here — the padded tail of the
                # edge block is uninitialized; a multiply-by-mask would propagate junk.
                valid = lane < (rem - k * 128)
                ps = ps + jnp.where(valid, blk, 0.0)
                pm = jnp.maximum(pm, jnp.where(valid, blk, -jnp.inf))
            else:
                ps = ps + blk
                pm = jnp.maximum(pm, blk)
            return ps, pm

        ps = sum_sc[...]          # (C, 128) per-lane partial sums
        pm = max_sc[...]          # (C, 128) per-lane partial maxes
        if n_chunks <= 16:
            # Short fixed trip count: full static unroll (LLO scheduler visibility).
            for k in range(n_chunks):
                ps, pm = chunk(k, ps, pm, static=True)
        else:
            # Large tiles: bounded live ranges / code size via moderately unrolled loop.
            def body(k, carry):
                return chunk(k, carry[0], carry[1], static=False)
            ps, pm = jax.lax.fori_loop(0, n_chunks, body, (ps, pm), unroll=unroll)
        sum_sc[...] = ps
        max_sc[...] = pm

    if ragged:
        @pl.when(s != last)
        def _():
            accumulate(masked=False)       # clean steady-state tiles

        @pl.when(s == last)
        def _():
            accumulate(masked=True)        # only the last tile pays the mask
    else:
        accumulate(masked=False)

    @pl.when(s == last)
    def _():
        # Single cross-lane collapse, once per batch element.
        avg_c = jnp.sum(sum_sc[...], axis=1, keepdims=True) * (1.0 / s_total)  # (C, 1)
        max_c = jnp.max(max_sc[...], axis=1, keepdims=True)                    # (C, 1)

        # Stack [avg | max] into a (C, 2) matrix via a lane select (avoids a minor-dim
        # concat) and run the shared no-bias MLP once:
        #   mlp(a) + mlp(m) == W2 @ (relu(W1 a) + relu(W1 m))
        lane2 = jax.lax.broadcasted_iota(jnp.int32, (c_total, 2), 1)
        v = jnp.where(lane2 == 0, avg_c, max_c)                                # (C, 2)
        h = jnp.maximum(
            jnp.dot(w1_ref[...], v, preferred_element_type=jnp.float32), 0.0)  # (Hp, 2)
        h_sum = jnp.sum(h, axis=1, keepdims=True)                              # (Hp, 1)
        gate = jax.nn.sigmoid(
            jnp.dot(w2_ref[...], h_sum, preferred_element_type=jnp.float32))   # (C, 1)

        # SpatialGate3d on the (B, C, 1, 1, 1) channel gate:
        ch_max = jnp.max(gate, axis=0, keepdims=True)                          # (1, 1)
        ch_mean = jnp.sum(gate, axis=0, keepdims=True) * (1.0 / c_total)       # (1, 1)
        sp = (wsp_ref[0] * ch_max + wsp_ref[1] * ch_mean) * bn_scale           # BN eval
        scale = jax.nn.sigmoid(sp)

        o_ref[0] = (gate * scale).astype(o_ref.dtype)


def cbam3d_forward(x, w1, w2, wsp, *, max_ts=32768, block_bytes_budget=4 << 20):
    """x: (B, C, D, H, W). w1: (Hp, C), w2: (C, Hp) zero-padded hidden dim. wsp: (2,).

    Returns (B, C, 1, 1, 1) — matches the PyTorch CBAM3d module output.
    """
    B, C, D, Hd, Wd = x.shape
    S = D * Hd * Wd
    Hp = w1.shape[0]
    assert w1.shape == (Hp, C) and w2.shape == (C, Hp)

    # Natural layout: (B, C, S). Pure reshape of contiguous NCDHW — no extra HBM pass.
    x_l = x.reshape(B, C, S)

    # Spatial tile: multiple of 128 lanes, capped by max_ts and a per-block byte budget.
    # Big tiles keep the per-grid-step overhead (~0.35 us) negligible vs the block DMA
    # (important on v7x's 3.2 TB/s HBM); double-buffered 2x budget still fits v5e's
    # 16 MiB scoped VMEM and is far inside v6e/v7x limits.
    def _round_up(a, m):
        return (a + m - 1) // m * m

    ts = min(max_ts, _round_up(S, 128))
    max_ts_vmem = max(128, (block_bytes_budget // (C * x.dtype.itemsize)) // 128 * 128)
    ts = max(128, min(ts, max_ts_vmem))
    num_s_tiles = pl.cdiv(S, ts)
    ragged = (S % ts) != 0
    n_chunks = ts // 128

    block_bytes = C * ts * x.dtype.itemsize
    # 2x block (double-buffered input) + generous margin for weights/scratch/internal.
    vmem_limit = int(min(48 << 20, max(16 << 20, 2 * block_bytes + (4 << 20))))

    kernel = functools.partial(
        _cbam3d_kernel,
        ts=ts,
        n_chunks=n_chunks,
        ragged=ragged,
        s_total=S,
        c_total=C,
        bn_scale=1.0 / math.sqrt(1.0 + 1e-5),
        unroll=max(1, min(8, n_chunks)),
    )

    cost = pl.CostEstimate(
        flops=2 * B * S * C + 4 * B * C * Hp,
        transcendentals=B * (C + 1),
        bytes_accessed=B * S * C * x.dtype.itemsize + 2 * C * Hp * 4 + B * C * 4,
    )

    out = pl.pallas_call(
        kernel,
        out_shape=jax.ShapeDtypeStruct((B, C, 1), x.dtype),
        grid_spec=pltpu.PrefetchScalarGridSpec(
            num_scalar_prefetch=0,
            grid=(B, num_s_tiles),
            in_specs=[
                pl.BlockSpec((1, C, ts), lambda b, s: (b, 0, s)),
                pl.BlockSpec((Hp, C), lambda b, s: (0, 0)),
                pl.BlockSpec((C, Hp), lambda b, s: (0, 0)),
                pl.BlockSpec(memory_space=pltpu.MemorySpace.SMEM),
            ],
            out_specs=pl.BlockSpec((1, C, 1), lambda b, s: (b, 0, 0)),
            scratch_shapes=[
                pltpu.VMEM((C, 128), jnp.float32),
                pltpu.VMEM((C, 128), jnp.float32),
            ],
        ),
        compiler_params=pltpu.CompilerParams(
            dimension_semantics=("parallel", "arbitrary"),
            vmem_limit_bytes=vmem_limit),
        cost_estimate=cost,
    )(x_l, w1, w2, wsp)

    return out.reshape(B, C, 1, 1, 1)


def cbam3d_reference(x, w1, w2, wsp):
    """Pure-JAX reference mirroring the PyTorch forward (eval-mode BN)."""
    B, C = x.shape[0], x.shape[1]
    avg = jnp.mean(x, axis=(2, 3, 4))                 # (B, C)
    mx = jnp.max(x, axis=(2, 3, 4))                   # (B, C)

    def mlp(v):
        return jnp.maximum(v @ w1.T, 0.0) @ w2.T

    gate = jax.nn.sigmoid(mlp(avg) + mlp(mx))         # (B, C)
    ch_max = jnp.max(gate, axis=1, keepdims=True)
    ch_mean = jnp.mean(gate, axis=1, keepdims=True)
    sp = (wsp[0] * ch_max + wsp[1] * ch_mean) / jnp.sqrt(1.0 + 1e-5)
    return (gate * jax.nn.sigmoid(sp)).reshape(B, C, 1, 1, 1)


if __name__ == "__main__":
    # Small shapes consistent with the module: gate_channels=32, reduction_ratio=16.
    B, C = 2, 32
    ratio = 16
    Hhid = C // ratio            # 2
    Hp = 8                       # zero-pad hidden dim to 8 (exact: relu(0) rows add 0)

    key = jax.random.PRNGKey(0)
    kx, k1, k2, k3 = jax.random.split(key, 4)

    # ChannelGate fc weights (Conv3d 1x1x1, no bias), squeezed to 2-D + zero-padded hidden.
    w_fc1 = 0.1 * jax.random.normal(k1, (Hhid, C), dtype=jnp.float32)   # Conv3d(C, C//r, 1)
    w_fc2 = 0.1 * jax.random.normal(k2, (C, Hhid), dtype=jnp.float32)   # Conv3d(C//r, C, 1)
    w1 = jnp.zeros((Hp, C), jnp.float32).at[:Hhid, :].set(w_fc1)        # (Hp, C)
    w2 = jnp.zeros((C, Hp), jnp.float32).at[:, :Hhid].set(w_fc2)        # (C, Hp)

    # SpatialGate 7x7x7 conv weight; only the center taps touch the 1x1x1 input.
    w_spatial = 0.1 * jax.random.normal(k3, (1, 2, 7, 7, 7), dtype=jnp.float32)
    wsp = jnp.asarray([w_spatial[0, 0, 3, 3, 3], w_spatial[0, 1, 3, 3, 3]],
                      dtype=jnp.float32)
    # TODO(synk): BatchNorm3d is reproduced in eval mode (default running stats); PyTorch
    # training-mode batch statistics are not modeled.

    def run_case(spatial_shape, **kw):
        xx = jax.random.normal(kx, (B, C) + spatial_shape, dtype=jnp.float32)
        out = jax.block_until_ready(cbam3d_forward(xx, w1, w2, wsp, **kw))
        ref = cbam3d_reference(xx, w1, w2, wsp)
        assert out.shape == (B, C, 1, 1, 1)
        assert jnp.allclose(out, ref, rtol=1e-5, atol=1e-6), \
            f"mismatch vs reference for spatial shape {spatial_shape}"

    run_case((8, 8, 8))                                      # divisible S, static unroll
    run_case((7, 6, 5))                                       # ragged single tile (masked)
    run_case((16, 16, 16))                                    # n_chunks=32 -> fori_loop path
    run_case((7, 6, 5), block_bytes_budget=C * 128 * 4)       # multi-tile + ragged last tile

    print("KERNEL_OK")
</pallas_src>

<mosaic_0001>
module attributes {stable_mosaic.version = 11 : i64} {
  func.func @_cbam3d_kernel(%arg0: i32, %arg1: i32, %arg2: memref<1x32x512xf32, #tpu.memory_space<vmem>>, %arg3: memref<8x32xf32, #tpu.memory_space<vmem>>, %arg4: memref<32x8xf32, #tpu.memory_space<vmem>>, %arg5: memref<2xf32, #tpu.memory_space<smem>>, %arg6: memref<1x32x1xf32, #tpu.memory_space<vmem>>, %arg7: memref<32x128xf32, #tpu.memory_space<vmem>>, %arg8: memref<32x128xf32, #tpu.memory_space<vmem>>) attributes {dimension_semantics = [#tpu.dimension_semantics<parallel>, #tpu.dimension_semantics<arbitrary>], iteration_bounds = array<i64: 2, 1>, scalar_prefetch = 0 : i64, scratch_operands = 2 : i64, tpu.core_type = #tpu.core_type<tc>, window_params = [{transform_indices = @transform_0, window_bounds = array<i64: 1, 32, 512>}, {pipeline_mode = #tpu.pipeline_mode<synchronous>, transform_indices = @transform_1, window_bounds = array<i64: 8, 32>}, {pipeline_mode = #tpu.pipeline_mode<synchronous>, transform_indices = @transform_2, window_bounds = array<i64: 32, 8>}, {transform_indices = @transform_3, window_bounds = array<i64: 2>}, {transform_indices = @transform_4, window_bounds = array<i64: 1, 32, 1>}]} {
    %c0_i32 = arith.constant 0 : i32
    %0 = arith.cmpi eq, %arg1, %c0_i32 : i32
    %1 = arith.extui %0 : i1 to i32
    %c0_i32_0 = arith.constant 0 : i32
    %2 = arith.cmpi ne, %1, %c0_i32_0 : i32
    scf.if %2 {
      %cst = arith.constant 0.000000e+00 : f32
      %26 = vector.broadcast %cst : f32 to vector<32x128xf32>
      %c0_19 = arith.constant 0 : index
      %c0_20 = arith.constant 0 : index
      %27 = vector.load %arg7[%c0_19, %c0_20] : memref<32x128xf32, #tpu.memory_space<vmem>>, vector<32x128xf32>
      tpu.vector_store %arg7[%c0_19, %c0_20], %26 {strides = array<i32>} : memref<32x128xf32, #tpu.memory_space<vmem>>, vector<32x128xf32>,
      %cst_21 = arith.constant 0xFF800000 : f32
      %28 = vector.broadcast %cst_21 : f32 to vector<32x128xf32>
      %c0_22 = arith.constant 0 : index
      %c0_23 = arith.constant 0 : index
      %29 = vector.load %arg8[%c0_22, %c0_23] : memref<32x128xf32, #tpu.memory_space<vmem>>, vector<32x128xf32>
      tpu.vector_store %arg8[%c0_22, %c0_23], %28 {strides = array<i32>} : memref<32x128xf32, #tpu.memory_space<vmem>>, vector<32x128xf32>,
    } else {
    }
    %c0 = arith.constant 0 : index
    %c0_1 = arith.constant 0 : index
    %3 = vector.load %arg7[%c0, %c0_1] : memref<32x128xf32, #tpu.memory_space<vmem>>, vector<32x128xf32>
    %c0_2 = arith.constant 0 : index
    %c0_3 = arith.constant 0 : index
    %4 = vector.load %arg8[%c0_2, %c0_3] : memref<32x128xf32, #tpu.memory_space<vmem>>, vector<32x128xf32>
    %c0_4 = arith.constant 0 : index
    %c0_5 = arith.constant 0 : index
    %c0_6 = arith.constant 0 : index
    %5 = vector.load %arg2[%c0_4, %c0_5, %c0_6] : memref<1x32x512xf32, #tpu.memory_space<vmem>>, vector<1x32x128xf32>
    %6 = vector.shape_cast %5 : vector<1x32x128xf32> to vector<32x128xf32>
    %7 = arith.addf %3, %6 : vector<32x128xf32>
    %8 = arith.maximumf %4, %6 : vector<32x128xf32>
    %c0_7 = arith.constant 0 : index
    %c0_8 = arith.constant 0 : index
    %c128 = arith.constant 128 : index
    %9 = vector.load %arg2[%c0_7, %c0_8, %c128] : memref<1x32x512xf32, #tpu.memory_space<vmem>>, vector<1x32x128xf32>
    %10 = vector.shape_cast %9 : vector<1x32x128xf32> to vector<32x128xf32>
    %11 = arith.addf %7, %10 : vector<32x128xf32>
    %12 = arith.maximumf %8, %10 : vector<32x128xf32>
    %c0_9 = arith.constant 0 : index
    %c0_10 = arith.constant 0 : index
    %c256 = arith.constant 256 : index
    %13 = vector.load %arg2[%c0_9, %c0_10, %c256] : memref<1x32x512xf32, #tpu.memory_space<vmem>>, vector<1x32x128xf32>
    %14 = vector.shape_cast %13 : vector<1x32x128xf32> to vector<32x128xf32>
    %15 = arith.addf %11, %14 : vector<32x128xf32>
    %16 = arith.maximumf %12, %14 : vector<32x128xf32>
    %c0_11 = arith.constant 0 : index
    %c0_12 = arith.constant 0 : index
    %c384 = arith.constant 384 : index
    %17 = vector.load %arg2[%c0_11, %c0_12, %c384] : memref<1x32x512xf32, #tpu.memory_space<vmem>>, vector<1x32x128xf32>
    %18 = vector.shape_cast %17 : vector<1x32x128xf32> to vector<32x128xf32>
    %19 = arith.addf %15, %18 : vector<32x128xf32>
    %20 = arith.maximumf %16, %18 : vector<32x128xf32>
    %c0_13 = arith.constant 0 : index
    %c0_14 = arith.constant 0 : index
    %21 = vector.load %arg7[%c0_13, %c0_14] : memref<32x128xf32, #tpu.memory_space<vmem>>, vector<32x128xf32>
    tpu.vector_store %arg7[%c0_13, %c0_14], %19 {strides = array<i32>} : memref<32x128xf32, #tpu.memory_space<vmem>>, vector<32x128xf32>,
    %c0_15 = arith.constant 0 : index
    %c0_16 = arith.constant 0 : index
    %22 = vector.load %arg8[%c0_15, %c0_16] : memref<32x128xf32, #tpu.memory_space<vmem>>, vector<32x128xf32>
    tpu.vector_store %arg8[%c0_15, %c0_16], %20 {strides = array<i32>} : memref<32x128xf32, #tpu.memory_space<vmem>>, vector<32x128xf32>,
    %c0_i32_17 = arith.constant 0 : i32
    %23 = arith.cmpi eq, %arg1, %c0_i32_17 : i32
    %24 = arith.extui %23 : i1 to i32
    %c0_i32_18 = arith.constant 0 : i32
    %25 = arith.cmpi ne, %24, %c0_i32_18 : i32
    scf.if %25 {
      %c0_19 = arith.constant 0 : index
      %c0_20 = arith.constant 0 : index
      %26 = vector.load %arg7[%c0_19, %c0_20] : memref<32x128xf32, #tpu.memory_space<vmem>>, vector<32x128xf32>
      %cst = arith.constant dense<0.000000e+00> : vector<32xf32>
      %27 = vector.multi_reduction <add>, %26, %cst [1] : vector<32x128xf32> to vector<32xf32>
      %28 = vector.shape_cast %27 : vector<32xf32> to vector<32x1xf32>
      %cst_21 = arith.constant 0.001953125 : f32
      %29 = vector.broadcast %cst_21 : f32 to vector<32x1xf32>
      %30 = arith.mulf %28, %29 : vector<32x1xf32>
      %c0_22 = arith.constant 0 : index
      %c0_23 = arith.constant 0 : index
      %31 = vector.load %arg8[%c0_22, %c0_23] : memref<32x128xf32, #tpu.memory_space<vmem>>, vector<32x128xf32>
      %cst_24 = arith.constant dense<0xFF800000> : vector<32xf32>
      %32 = vector.multi_reduction <maximumf>, %31, %cst_24 [1] : vector<32x128xf32> to vector<32xf32>
      %33 = vector.shape_cast %32 : vector<32xf32> to vector<32x1xf32>
      %34 = tpu.iota {dimensions = array<i32: 1>} : vector<32x2xi32>
      %c0_i32_25 = arith.constant 0 : i32
      %35 = vector.broadcast %c0_i32_25 : i32 to vector<32x2xi32>
      %36 = arith.cmpi eq, %34, %35 : vector<32x2xi32>
      %37 = vector.shape_cast %30 : vector<32x1xf32> to vector<32x1xf32>
      %38 = vector.broadcast %37 : vector<32x1xf32> to vector<32x2xf32>
      %39 = vector.shape_cast %33 : vector<32x1xf32> to vector<32x1xf32>
      %40 = vector.broadcast %39 : vector<32x1xf32> to vector<32x2xf32>
      %41 = arith.select %36, %38, %40 : vector<32x2xi1>, vector<32x2xf32>
      %c0_26 = arith.constant 0 : index
      %c0_27 = arith.constant 0 : index
      %42 = vector.load %arg3[%c0_26, %c0_27] : memref<8x32xf32, #tpu.memory_space<vmem>>, vector<8x32xf32>
      %cst_28 = arith.constant dense<0.000000e+00> : vector<8x2xf32>
      %43 = tpu.matmul %42, %41, %cst_28 {dimension_numbers = #tpu.dot_dimension_numbers<[1], [0], [0], [1], [0, 0, 1, 1], [], []>} : vector<8x32xf32>, vector<32x2xf32>, vector<8x2xf32> -> vector<8x2xf32>
      %cst_29 = arith.constant 0.000000e+00 : f32
      %44 = vector.broadcast %cst_29 : f32 to vector<8x2xf32>
      %45 = arith.maximumf %43, %44 : vector<8x2xf32>
      %cst_30 = arith.constant dense<0.000000e+00> : vector<8xf32>
      %46 = vector.multi_reduction <add>, %45, %cst_30 [1] : vector<8x2xf32> to vector<8xf32>
      %47 = vector.shape_cast %46 : vector<8xf32> to vector<8x1xf32>
      %c0_31 = arith.constant 0 : index
      %c0_32 = arith.constant 0 : index
      %48 = vector.load %arg4[%c0_31, %c0_32] : memref<32x8xf32, #tpu.memory_space<vmem>>, vector<32x8xf32>
      %cst_33 = arith.constant dense<0.000000e+00> : vector<32x1xf32>
      %49 = tpu.matmul %48, %47, %cst_33 {dimension_numbers = #tpu.dot_dimension_numbers<[1], [0], [0], [1], [0, 0, 1, 1], [], []>} : vector<32x8xf32>, vector<8x1xf32>, vector<32x1xf32> -> vector<32x1xf32>
      %50 = arith.negf %49 : vector<32x1xf32>
      %51 = math.exp %50 : vector<32x1xf32>
      %cst_34 = arith.constant 1.000000e+00 : f32
      %52 = vector.broadcast %cst_34 : f32 to vector<32x1xf32>
      %53 = arith.addf %52, %51 : vector<32x1xf32>
      %54 = arith.divf %52, %53 : vector<32x1xf32>
      %cst_35 = arith.constant dense<0xFF800000> : vector<1xf32>
      %55 = vector.multi_reduction <maximumf>, %54, %cst_35 [0] : vector<32x1xf32> to vector<1xf32>
      %56 = vector.shape_cast %55 : vector<1xf32> to vector<1x1xf32>
      %cst_36 = arith.constant dense<0.000000e+00> : vector<1xf32>
      %57 = vector.multi_reduction <add>, %54, %cst_36 [0] : vector<32x1xf32> to vector<1xf32>
      %58 = vector.shape_cast %57 : vector<1xf32> to vector<1x1xf32>
      %cst_37 = arith.constant 3.125000e-02 : f32
      %59 = vector.broadcast %cst_37 : f32 to vector<1x1xf32>
      %60 = arith.mulf %58, %59 : vector<1x1xf32>
      %c0_38 = arith.constant 0 : index
      %61 = memref.load %arg5[%c0_38] : memref<2xf32, #tpu.memory_space<smem>>
      %62 = vector.broadcast %61 : f32 to vector<1x1xf32>
      %63 = arith.mulf %62, %56 : vector<1x1xf32>
      %c1 = arith.constant 1 : index
      %64 = memref.load %arg5[%c1] : memref<2xf32, #tpu.memory_space<smem>>
      %65 = vector.broadcast %64 : f32 to vector<1x1xf32>
      %66 = arith.mulf %65, %60 : vector<1x1xf32>
      %67 = arith.addf %63, %66 : vector<1x1xf32>
      %cst_39 = arith.constant 0.999994993 : f32
      %68 = vector.broadcast %cst_39 : f32 to vector<1x1xf32>
      %69 = arith.mulf %67, %68 : vector<1x1xf32>
      %70 = arith.negf %69 : vector<1x1xf32>
      %71 = math.exp %70 : vector<1x1xf32>
      %cst_40 = arith.constant 1.000000e+00 : f32
      %72 = vector.broadcast %cst_40 : f32 to vector<1x1xf32>
      %73 = arith.addf %72, %71 : vector<1x1xf32>
      %74 = arith.divf %72, %73 : vector<1x1xf32>
      %75 = vector.broadcast %74 : vector<1x1xf32> to vector<32x1xf32>
      %76 = arith.mulf %54, %75 : vector<32x1xf32>
      %c0_41 = arith.constant 0 : index
      %c0_42 = arith.constant 0 : index
      %c0_43 = arith.constant 0 : index
      %77 = vector.load %arg6[%c0_41, %c0_42, %c0_43] : memref<1x32x1xf32, #tpu.memory_space<vmem>>, vector<1x32x1xf32>
      %78 = vector.shape_cast %77 : vector<1x32x1xf32> to vector<32x1xf32>
      %79 = vector.shape_cast %76 : vector<32x1xf32> to vector<1x32x1xf32>
      tpu.vector_store %arg6[%c0_41, %c0_42, %c0_43], %79 {strides = array<i32>} : memref<1x32x1xf32, #tpu.memory_space<vmem>>, vector<1x32x1xf32>,
    } else {
    }
    return
  }
  func.func @transform_0(%arg0: i32, %arg1: i32) -> (i32, i32, i32) {
    %c0_i32 = arith.constant 0 : i32
    %c0_i32_0 = arith.constant 0 : i32
    return %arg0, %c0_i32, %arg1 : i32, i32, i32
  }
  func.func @transform_1(%arg0: i32, %arg1: i32) -> (i32, i32) {
    %c0_i32 = arith.constant 0 : i32
    %c0_i32_0 = arith.constant 0 : i32
    %c0_i32_1 = arith.constant 0 : i32
    return %c0_i32, %c0_i32_0 : i32, i32
  }
  func.func @transform_2(%arg0: i32, %arg1: i32) -> (i32, i32) {
    %c0_i32 = arith.constant 0 : i32
    %c0_i32_0 = arith.constant 0 : i32
    %c0_i32_1 = arith.constant 0 : i32
    return %c0_i32, %c0_i32_0 : i32, i32
  }
  func.func @transform_3(%arg0: i32, %arg1: i32) -> i32 {
    %c0_i32 = arith.constant 0 : i32
    %c0_i32_0 = arith.constant 0 : i32
    return %c0_i32 : i32
  }
  func.func @transform_4(%arg0: i32, %arg1: i32) -> (i32, i32, i32) {
    %c0_i32 = arith.constant 0 : i32
    %c0_i32_0 = arith.constant 0 : i32
    %c0_i32_1 = arith.constant 0 : i32
    return %arg0, %c0_i32, %c0_i32_0 : i32, i32, i32
  }
}

</mosaic_0001>

<llo_original>
// kernel: tpu_custom_call.1
$region0: #{tpu_custom_call.1}
  #allocation0 [shape = 'u32[]', space=smem, size = 0x4, offset = 0x4, fixed_abs, tag = 'smem constant byte address 0x4 - core index']
  #allocation1 [shape = 'u32[144,128]{1,0:T(1,128)}', space=vmem, size = 0x12000, scoped, tag = 'internal scratch']
  #allocation2 [shape = 'f32[32,128]{1,0:T(8,128)}', space=vmem, size = 0x4000, scoped, tag = 'scratch operand']
  #allocation3 [shape = 'f32[32,128]{1,0:T(8,128)}', space=vmem, size = 0x4000, scoped, tag = 'scratch operand']
  %s0 = inlined_call_operand.hbm [shape: f32[2,32,512], index: 0, kind: input, shape index: {}]
  %s1 = inlined_call_operand.vmem [shape: f32[8,32], index: 1, kind: input, shape index: {}]
  %s2 = inlined_call_operand.vmem [shape: f32[32,8], index: 2, kind: input, shape index: {}]
  %s3 = inlined_call_operand.vmem [shape: f32[2], index: 3, kind: input, shape index: {}]
  %s4 = inlined_call_operand.vmem [shape: f32[2,32,1], index: 4, kind: output, shape index: {}]
  %s5 = sld [smem:[#allocation0]]
  $region65: #{tpu_custom_call.1} parent=0
    _
  %s7 = ssub.s32 1, %s5
  %s8 = scalar_select 0, %s7, %s5
  $region1: #{tpu_custom_call.1} parent=0
    #allocation4 [shape = 'u8[131072]{0}', space=vmem, size = 0x20000, scoped, tag = 'input window, operand 0']
    #allocation5 [shape = 's32[2]{0}', space=sflag, size = 0x8, scoped, tag = 'scoped memory for tpu_custom_call.1']
    #allocation6 [shape = 's32[2]{0}', space=sflag, size = 0x8, scoped, tag = 'scoped memory for tpu_custom_call.1']
    #allocation7 [shape = 'u8[512]{0}', space=smem, size = 0x200, scoped, tag = 'input window, operand 3, single buffered']
    %9 = vsyncpa [#allocation5], 0
    %s10 = scalar_lea.sflag [#allocation5], 1
    %11 = vsyncpa %s10, 0
    %12 = vsyncpa [#allocation6], 0
    loop: start=0, step=1, limit=4
    $region2: #{tpu_custom_call.1} parent=1 // loop_pre_header
      _
    $region3: #{tpu_custom_call.1} parent=1 // loop_header
      %s14 = sphi 0, %s18
      %p15 = scmp.ge.s32.totalorder %s14, 4
      %s21 = sphi 0, %s33
      %s22 = sphi 0, %s29
      %s23 = sphi 0, %s21
      %s24 = sphi 0, %s22
      %s25 = sphi 0, %s23
      %s26 = sphi 0, %s24
      %s38 = sphi 0, %s40
      %s41 = sphi 0, %s38
      %s42 = sphi 0, %s41
      %s58 = sphi 0, %s42
      %s62 = sphi 0, %s62
      %s64 = sphi 0, %s62
      %s65 = sphi 0, %s64
      %s79 = sphi 0, %s65
      %s83 = sphi 0, %s83
      %s85 = sphi 0, %s83
      %s86 = sphi 0, %s85
      %s100 = sphi 0, %s86
      %s104 = sphi 0, %s104
      %s106 = sphi 0, %s104
      %s107 = sphi 0, %s106
      %s121 = sphi 0, %s107
      %s127 = sphi 0, %s129
      %s130 = sphi 0, %s127
      %s131 = sphi 0, %s130
      %s147 = sphi 0, %s131
    $region4: #{tpu_custom_call.1} parent=1 // loop_header_branch
      %17 = sbr.rel (%p15) target = $region8
    $region5: #{tpu_custom_call.1} parent=1 // loop_body
      %s19 = ssub.s32 %s14, 1
      %s20 = ssub.s32 %s14, 2
      %s27 = sadd.s32 1, %s22
      %p28 = scmp.ge.s32.totalorder %s27, 1
      %s29 = scalar_select %p28, 0, %s27
      %s30 = sadd.s32 1, %s21
      %s31 = scalar_select %p28, %s30, %s21
      %p32 = scmp.ge.s32.totalorder %s31, 2
      %s33 = scalar_select %p32, 0, %s31
      %s34 = ssub.s32 %s21, %s33
      %s35 = ssub.s32 %s22, %s29
      %s36 = sor.u32 %s34, %s35
      %p37 = scmp.eq.s32.totalorder %s36, 0
      %s39 = sadd.s32 %s38, 1
      %s40 = scalar_select %p37, %s38, %s39
      %p43 = pneg %p37
      %p44 = scmp.eq.s32.totalorder %s14, 1
      %p45 = por %p43, %p44
      %p46 = scmp.ne.s32.totalorder %s38, %s41
      %p47 = scmp.eq.s32.totalorder %s14, 0
      %p48 = por %p46, %p47
      %p49 = scmp.ne.s32.totalorder %s38, %s41
      %p50 = scmp.eq.s32.totalorder %s19, 1
      %p51 = por %p49, %p50
      %p52 = scmp.ne.s32.totalorder %s41, %s42
      %p53 = scmp.eq.s32.totalorder %s19, 0
      %p54 = por %p52, %p53
      %p55 = scmp.ne.s32.totalorder %s41, %s42
      %p56 = scmp.eq.s32.totalorder %s20, 1
      %p57 = por %p55, %p56
      %p59 = scmp.ne.s32.totalorder %s42, %s58
      %p60 = scmp.eq.s32.totalorder %s20, 0
      %p61 = por %p59, %p60
      %s63 = sadd.s32 %s62, 1
      %p66 = scmp.eq.s32.totalorder %s14, 1
      %p67 = scmp.ne.s32.totalorder %s62, %s64
      %p68 = scmp.eq.s32.totalorder %s14, 0
      %p69 = por %p67, %p68
      %p70 = scmp.ne.s32.totalorder %s62, %s64
      %p71 = scmp.eq.s32.totalorder %s19, 1
      %p72 = por %p70, %p71
      %p73 = scmp.ne.s32.totalorder %s64, %s65
      %p74 = scmp.eq.s32.totalorder %s19, 0
      %p75 = por %p73, %p74
      %p76 = scmp.ne.s32.totalorder %s64, %s65
      %p77 = scmp.eq.s32.totalorder %s20, 1
      %p78 = por %p76, %p77
      %p80 = scmp.ne.s32.totalorder %s65, %s79
      %p81 = scmp.eq.s32.totalorder %s20, 0
      %p82 = por %p80, %p81
      %s84 = sadd.s32 %s83, 1
      %p87 = scmp.eq.s32.totalorder %s14, 1
      %p88 = scmp.ne.s32.totalorder %s83, %s85
      %p89 = scmp.eq.s32.totalorder %s14, 0
      %p90 = por %p88, %p89
      %p91 = scmp.ne.s32.totalorder %s83, %s85
      %p92 = scmp.eq.s32.totalorder %s19, 1
      %p93 = por %p91, %p92
      %p94 = scmp.ne.s32.totalorder %s85, %s86
      %p95 = scmp.eq.s32.totalorder %s19, 0
      %p96 = por %p94, %p95
      %p97 = scmp.ne.s32.totalorder %s85, %s86
      %p98 = scmp.eq.s32.totalorder %s20, 1
      %p99 = por %p97, %p98
      %p101 = scmp.ne.s32.totalorder %s86, %s100
      %p102 = scmp.eq.s32.totalorder %s20, 0
      %p103 = por %p101, %p102
      %s105 = sadd.s32 %s104, 1
      %p108 = scmp.eq.s32.totalorder %s14, 1
      %p109 = scmp.ne.s32.totalorder %s104, %s106
      %p110 = scmp.eq.s32.totalorder %s14, 0
      %p111 = por %p109, %p110
      %p112 = scmp.ne.s32.totalorder %s104, %s106
      %p113 = scmp.eq.s32.totalorder %s19, 1
      %p114 = por %p112, %p113
      %p115 = scmp.ne.s32.totalorder %s106, %s107
      %p116 = scmp.eq.s32.totalorder %s19, 0
      %p117 = por %p115, %p116
      %p118 = scmp.ne.s32.totalorder %s106, %s107
      %p119 = scmp.eq.s32.totalorder %s20, 1
      %p120 = por %p118, %p119
      %p122 = scmp.ne.s32.totalorder %s107, %s121
      %p123 = scmp.eq.s32.totalorder %s20, 0
      %p124 = por %p122, %p123
      %s125 = ssub.s32 %s21, %s33
      %p126 = scmp.eq.s32.totalorder %s125, 0
      %s128 = sadd.s32 %s127, 1
      %s129 = scalar_select %p126, %s127, %s128
      %p132 = pneg %p126
      %p133 = scmp.eq.s32.totalorder %s14, 1
      %p134 = por %p132, %p133
      %p135 = scmp.ne.s32.totalorder %s127, %s130
      %p136 = scmp.eq.s32.totalorder %s14, 0
      %p137 = por %p135, %p136
      %p138 = scmp.ne.s32.totalorder %s127, %s130
      %p139 = scmp.eq.s32.totalorder %s19, 1
      %p140 = por %p138, %p139
      %p141 = scmp.ne.s32.totalorder %s130, %s131
      %p142 = scmp.eq.s32.totalorder %s19, 0
      %p143 = por %p141, %p142
      %p144 = scmp.ne.s32.totalorder %s130, %s131
      %p145 = scmp.eq.s32.totalorder %s20, 1
      %p146 = por %p144, %p145
      %p148 = scmp.ne.s32.totalorder %s131, %s147
      %p149 = scmp.eq.s32.totalorder %s20, 0
      %p150 = por %p148, %p149
      %p151 = scmp.le.s32.totalorder 1, %s14
      %p152 = scmp.lt.s32.totalorder %s14, 3
      %p153 = pnand %p151, %p152
      %p154 = pneg %p153
      // Predicated region
      $region9: #{tpu_custom_call.1} parent=5 // pred_check
        _
      $region10: #{tpu_custom_call.1} parent=5 // pred_check_branch
        %156 = sbr.rel (%p153) target = $region12
      $region11: #{tpu_custom_call.1} parent=5 // pred_region
        %s157 = ssub.s32 %s14, 1
        // Predicated region
        $region13: #{tpu_custom_call.1} parent=11 // pred_check
          %p158 = pneg %p75
        $region14: #{tpu_custom_call.1} parent=11 // pred_check_branch
          %160 = sbr.rel (%p158) target = $region16
        $region15: #{tpu_custom_call.1} parent=11 // pred_region
          _
        $region16: #{tpu_custom_call.1} parent=11 // pred_fallthru
          _
        // Predicated region
        $region17: #{tpu_custom_call.1} parent=11 // pred_check
          %p161 = pneg %p96
        $region18: #{tpu_custom_call.1} parent=11 // pred_check_branch
          %163 = sbr.rel (%p161) target = $region20
        $region19: #{tpu_custom_call.1} parent=11 // pred_region
          _
        $region20: #{tpu_custom_call.1} parent=11 // pred_fallthru
          _
        // Predicated region
        $region21: #{tpu_custom_call.1} parent=11 // pred_check
          %p164 = pneg %p117
        $region22: #{tpu_custom_call.1} parent=11 // pred_check_branch
          %166 = sbr.rel (%p164) target = $region24
        $region23: #{tpu_custom_call.1} parent=11 // pred_region
          %s168 = ssub.s32 16, 16
          %169 = vsyncadd [#allocation6], %s168
          %s171 = sshll.u32 %s3, 4
          %s172 = int_to_ptr.vmem [resolvable:$true] %s171
          %174 = dma.vmem_to_smem %s172, 16, [#allocation7], [#allocation6]
        $region24: #{tpu_custom_call.1} parent=11 // pred_fallthru
          _
      $region12: #{tpu_custom_call.1} parent=5 // pred_fallthru
        _
      %p175 = scmp.lt.s32.totalorder %s14, 2
      // Predicated region
      $region25: #{tpu_custom_call.1} parent=5 // pred_check
        %p176 = pneg %p175
      $region26: #{tpu_custom_call.1} parent=5 // pred_check_branch
        %178 = sbr.rel (%p176) target = $region28
      $region27: #{tpu_custom_call.1} parent=5 // pred_region
        // Predicated region
        $region29: #{tpu_custom_call.1} parent=27 // pred_check
          %p179 = pneg %p48
        $region30: #{tpu_custom_call.1} parent=27 // pred_check_branch
          %181 = sbr.rel (%p179) target = $region32
        $region31: #{tpu_custom_call.1} parent=27 // pred_region
          %s182 = sand.u32 %s38, 1
          %s183 = scalar_lea.sflag [#allocation5], %s182
          %s184 = sand.u32 %s38, 1
          %s185 = smul.addr %s184, 128
          %s186 = scalar_lea.vmem [#allocation4], %s185
          %s187 = smul.u32 4, %s22
          %s189 = ssub.s32 2048, 2048
          %190 = vsyncadd %s183, %s189
          %s191 = smul.addr %s21, 16
          %s192 = sadd.s32 %s187, %s191
          %s193 = smul.addr %s192, 128
          %s194 = scalar_lea.hbm %s0, %s193
          %s195 = sshll.u32 %s186, 4
          %s196 = int_to_ptr.vmem [resolvable:$true] %s195
          %201 = dma.hbm_to_vmem [thread:$0]  %s194, 2048, %s196, %s183, 512, 512, 32
        $region32: #{tpu_custom_call.1} parent=27 // pred_fallthru
          _
      $region28: #{tpu_custom_call.1} parent=5 // pred_fallthru
        _
      %p202 = scmp.le.s32.totalorder 1, %s14
      %p203 = scmp.lt.s32.totalorder %s14, 3
      %p204 = pnand %p202, %p203
      %p205 = pneg %p204
      // Predicated region
      $region33: #{tpu_custom_call.1} parent=5 // pred_check
        _
      $region34: #{tpu_custom_call.1} parent=5 // pred_check_branch
        %207 = sbr.rel (%p204) target = $region36
      $region35: #{tpu_custom_call.1} parent=5 // pred_region
        %s208 = ssub.s32 %s14, 1
        %s209 = sand.u32 %s41, 1
        %s210 = scalar_lea.sflag [#allocation5], %s209
        %s211 = sand.u32 %s41, 1
        %s212 = smul.addr %s211, 128
        %s213 = scalar_lea.vmem [#allocation4], %s212
        // Predicated region
        $region37: #{tpu_custom_call.1} parent=35 // pred_check
          %p214 = pneg %p54
        $region38: #{tpu_custom_call.1} parent=35 // pred_check_branch
          %216 = sbr.rel (%p214) target = $region40
        $region39: #{tpu_custom_call.1} parent=35 // pred_region
          %217 = dma.done %s210, 2048
        $region40: #{tpu_custom_call.1} parent=35 // pred_fallthru
          _
        // Predicated region
        $region41: #{tpu_custom_call.1} parent=35 // pred_check
          %p218 = pneg %p117
        $region42: #{tpu_custom_call.1} parent=35 // pred_check_branch
          %220 = sbr.rel (%p218) target = $region44
        $region43: #{tpu_custom_call.1} parent=35 // pred_region
          %221 = dma.done [#allocation6], 16
        $region44: #{tpu_custom_call.1} parent=35 // pred_fallthru
          _
        %222 = sfence
        %s223 = sand.u32 %s41, 1
        %s224 = scalar_lea.sflag [#allocation5], %s223
        %s225 = sand.u32 %s41, 1
        %s226 = smul.addr %s225, 128
        %s227 = scalar_lea.vmem [#allocation4], %s226
        %p228 = pneg %p54
        %p229 = pneg %p51
        %p230 = pneg %p75
        %p231 = pneg %p72
        %p232 = pneg %p96
        %p233 = pneg %p93
        %p234 = pneg %p117
        %p235 = pneg %p114
        %p236 = pneg %p143
        %p237 = pneg %p140
        %p238 = scmp.lt.s32.totalorder %s23, 1
        %s239 = scalar_select %p238, %s23, 1
        %s240 = smul.addr %s239, 4
        %s241 = smul.addr %s240, 8
        %s242 = scalar_lea.vmem %s4, %s241
        %s243 = smul.u32 4, %s24
        %p244 = scmp.lt.s32.totalorder %s23, 1
        %s245 = scalar_select %p244, %s23, 1
        %s246 = smul.addr %s245, 4
        %s247 = smul.addr %s246, 8
        %s248 = scalar_lea.vmem %s4, %s247
        %p249 = scmp.eq.s32.totalorder %s24, 0
        // Predicated region
        $region45: #{tpu_custom_call.1} parent=35 // pred_check
          %p250 = pneg %p249
        $region46: #{tpu_custom_call.1} parent=35 // pred_check_branch
          %252 = sbr.rel (%p250) target = $region48
        $region47: #{tpu_custom_call.1} parent=35 // pred_region
          %253 = vst [vmem:[#allocation2] sm:$0xff] 0.0
          %254 = vst [vmem:[#allocation2 + $0x8] sm:$0xff] 0.0
          %255 = vst [vmem:[#allocation2 + $0x10] sm:$0xff] 0.0
          %256 = vst [vmem:[#allocation2 + $0x18] sm:$0xff] 0.0
          %257 = vst [vmem:[#allocation3] sm:$0xff] -inf
          %258 = vst [vmem:[#allocation3 + $0x8] sm:$0xff] -inf
          %259 = vst [vmem:[#allocation3 + $0x10] sm:$0xff] -inf
          %260 = vst [vmem:[#allocation3 + $0x18] sm:$0xff] -inf
        $region48: #{tpu_custom_call.1} parent=35 // pred_fallthru
          _
        %v261 = vld [vmem:[#allocation2] sm:$0xff]
        %v262 = vld [vmem:[#allocation2 + $0x8] sm:$0xff]
        %v263 = vld [vmem:[#allocation2 + $0x10] sm:$0xff]
        %v264 = vld [vmem:[#allocation2 + $0x18] sm:$0xff]
        %v265 = vld [vmem:[#allocation3] sm:$0xff]
        %v266 = vld [vmem:[#allocation3 + $0x8] sm:$0xff]
        %v267 = vld [vmem:[#allocation3 + $0x10] sm:$0xff]
        %v268 = vld [vmem:[#allocation3 + $0x18] sm:$0xff]
        %v269 = vld [vmem:[%s213] sm:$0xff]
        %v270 = vld [vmem:[%s213 + $0x20] sm:$0xff]
        %v271 = vld [vmem:[%s213 + $0x40] sm:$0xff]
        %v272 = vld [vmem:[%s213 + $0x60] sm:$0xff]
        %v273 = vadd.f32 %v261, %v269
        %v274 = vadd.f32 %v262, %v270
        %v275 = vadd.f32 %v263, %v271
        %v276 = vadd.f32 %v264, %v272
        %v277 = vmax.f32 %v265, %v269
        %v278 = vmax.f32 %v266, %v270
        %v279 = vmax.f32 %v267, %v271
        %v280 = vmax.f32 %v268, %v272
        %v281 = vld [vmem:[%s213 + $0x8] sm:$0xff]
        %v282 = vld [vmem:[%s213 + $0x28] sm:$0xff]
        %v283 = vld [vmem:[%s213 + $0x48] sm:$0xff]
        %v284 = vld [vmem:[%s213 + $0x68] sm:$0xff]
        %v285 = vadd.f32 %v273, %v281
        %v286 = vadd.f32 %v274, %v282
        %v287 = vadd.f32 %v275, %v283
        %v288 = vadd.f32 %v276, %v284
        %v289 = vmax.f32 %v277, %v281
        %v290 = vmax.f32 %v278, %v282
        %v291 = vmax.f32 %v279, %v283
        %v292 = vmax.f32 %v280, %v284
        %v293 = vld [vmem:[%s213 + $0x10] sm:$0xff]
        %v294 = vld [vmem:[%s213 + $0x30] sm:$0xff]
        %v295 = vld [vmem:[%s213 + $0x50] sm:$0xff]
        %v296 = vld [vmem:[%s213 + $0x70] sm:$0xff]
        %v297 = vadd.f32 %v285, %v293
        %v298 = vadd.f32 %v286, %v294
        %v299 = vadd.f32 %v287, %v295
        %v300 = vadd.f32 %v288, %v296
        %v301 = vmax.f32 %v289, %v293
        %v302 = vmax.f32 %v290, %v294
        %v303 = vmax.f32 %v291, %v295
        %v304 = vmax.f32 %v292, %v296
        %v305 = vld [vmem:[%s213 + $0x18] sm:$0xff]
        %v306 = vld [vmem:[%s213 + $0x38] sm:$0xff]
        %v307 = vld [vmem:[%s213 + $0x58] sm:$0xff]
        %v308 = vld [vmem:[%s213 + $0x78] sm:$0xff]
        %v309 = vadd.f32 %v297, %v305
        %v310 = vadd.f32 %v298, %v306
        %v311 = vadd.f32 %v299, %v307
        %v312 = vadd.f32 %v300, %v308
        %v313 = vmax.f32 %v301, %v305
        %v314 = vmax.f32 %v302, %v306
        %v315 = vmax.f32 %v303, %v307
        %v316 = vmax.f32 %v304, %v308
        %317 = vst [vmem:[#allocation2] sm:$0xff] %v309
        %318 = vst [vmem:[#allocation2 + $0x8] sm:$0xff] %v310
        %319 = vst [vmem:[#allocation2 + $0x10] sm:$0xff] %v311
        %320 = vst [vmem:[#allocation2 + $0x18] sm:$0xff] %v312
        %321 = vst [vmem:[#allocation3] sm:$0xff] %v313
        %322 = vst [vmem:[#allocation3 + $0x8] sm:$0xff] %v314
        %323 = vst [vmem:[#allocation3 + $0x10] sm:$0xff] %v315
        %324 = vst [vmem:[#allocation3 + $0x18] sm:$0xff] %v316
        // Predicated region
        $region49: #{tpu_custom_call.1} parent=35 // pred_check
          %p325 = pneg %p249
        $region50: #{tpu_custom_call.1} parent=35 // pred_check_branch
          %327 = sbr.rel (%p325) target = $region52
        $region51: #{tpu_custom_call.1} parent=35 // pred_region
          %v328 = vld [vmem:[#allocation2] sm:$0xff]
          %v329 = vld [vmem:[#allocation2 + $0x8] sm:$0xff]
          %v330 = vld [vmem:[#allocation2 + $0x10] sm:$0xff]
          %v331 = vld [vmem:[#allocation2 + $0x18] sm:$0xff]
          %332 = vadd.xlane.f32.xlu0 %v328
          %v333 = vpop.xlane.xlu0 %332
          %334 = vadd.xlane.f32.xlu0 %v329
          %v335 = vpop.xlane.xlu0 %334
          %336 = vadd.xlane.f32.xlu0 %v330
          %v337 = vpop.xlane.xlu0 %336
          %338 = vadd.xlane.f32.xlu0 %v331
          %v339 = vpop.xlane.xlu0 %338
          %v340 = vmul.f32 %v333, 0.001953125
          %v341 = vmul.f32 %v335, 0.001953125
          %v342 = vmul.f32 %v337, 0.001953125
          %v343 = vmul.f32 %v339, 0.001953125
          %v344 = vld [vmem:[#allocation3] sm:$0xff]
          %v345 = vld [vmem:[#allocation3 + $0x8] sm:$0xff]
          %v346 = vld [vmem:[#allocation3 + $0x10] sm:$0xff]
          %v347 = vld [vmem:[#allocation3 + $0x18] sm:$0xff]
          %348 = vmax.xlane.f32.xlu0 %v344
          %v349 = vpop.xlane.xlu0 %348
          %350 = vmax.xlane.f32.xlu0 %v345
          %v351 = vpop.xlane.xlu0 %350
          %352 = vmax.xlane.f32.xlu0 %v346
          %v353 = vpop.xlane.xlu0 %352
          %354 = vmax.xlane.f32.xlu0 %v347
          %v355 = vpop.xlane.xlu0 %354
          %v356 = vlaneseq
          %v357 = vand.u32 %v356, 127
          %vm358 = vcmp.eq.s32.totalorder %v357, 0
          %v359 = vsel %vm358, %v340, %v349
          %v360 = vsel %vm358, %v341, %v351
          %v361 = vsel %vm358, %v342, %v353
          %v362 = vsel %vm358, %v343, %v355
          %v363 = vld [vmem:[%s1] sm:$0xff]
          %vm364 = vcmask 261120
          %v366 = vsel %vm364, %v363, 0
          %368 = vmatprep.subr.mxu0 0.0
          %369 = vmatpush1.msra.mxu0 %v359
          %370 = vmatprep.subr.mxu0 0.0
          %371 = vmatpush1.msra.mxu0 %v360
          %372 = vmatprep.subr.mxu0 0.0
          %373 = vmatpush1.msra.mxu0 %v361
          %374 = vmatprep.subr.mxu0 0.0
          %375 = vmatpush1.msra.mxu0 %v362
          %376 = vmatprep.subr.mxu0 0.0
          %377 = vmatpush1.msra.mxu0 0.0
          %378 = vmatprep.subr.mxu0 0.0
          %379 = vmatpush1.msra.mxu0 0.0
          %380 = vmatprep.subr.mxu0 0.0
          %381 = vmatpush1.msra.mxu0 0.0
          %382 = vmatprep.subr.mxu0 0.0
          %383 = vmatpush1.msra.mxu0 0.0
          %384 = vmatprep.subr.mxu0 0.0
          %385 = vmatpush1.msra.mxu0 0.0
          %386 = vmatprep.subr.mxu0 0.0
          %387 = vmatpush1.msra.mxu0 0.0
          %388 = vmatprep.subr.mxu0 0.0
          %389 = vmatpush1.msra.mxu0 0.0
          %390 = vmatprep.subr.mxu0 0.0
          %391 = vmatpush1.msra.mxu0 0.0
          %392 = vmatprep.subr.mxu0 0.0
          %393 = vmatpush1.msra.mxu0 0.0
          %394 = vmatprep.subr.mxu0 0.0
          %395 = vmatpush1.msra.mxu0 0.0
          %396 = vmatprep.subr.mxu0 0.0
          %397 = vmatpush1.msra.mxu0 0.0
          %398 = vmatprep.subr.mxu0 0.0
          %399 = vmatpush1.msra.mxu0 0.0
          %400 = vmatprep.subr.mxu0 0.0
          %401 = vmatpush1.msra.mxu0 0.0
          %402 = vmatprep.subr.mxu0 0.0
          %403 = vmatpush1.msra.mxu0 0.0
          %404 = vmatprep.subr.mxu0 0.0
          %405 = vmatpush1.msra.mxu0 0.0
          %406 = vmatprep.subr.mxu0 0.0
          %407 = vmatpush1.msra.mxu0 0.0
          %408 = vmatprep.subr.mxu0 0.0
          %409 = vmatpush1.msra.mxu0 0.0
          %410 = vmatprep.subr.mxu0 0.0
          %411 = vmatpush1.msra.mxu0 0.0
          %412 = vmatprep.subr.mxu0 0.0
          %413 = vmatpush1.msra.mxu0 0.0
          %414 = vmatprep.subr.mxu0 0.0
          %415 = vmatpush1.msra.mxu0 0.0
          %416 = vmatprep.subr.mxu0 0.0
          %417 = vmatpush1.msra.mxu0 0.0
          %418 = vmatprep.subr.mxu0 0.0
          %419 = vmatpush1.msra.mxu0 0.0
          %420 = vmatprep.subr.mxu0 0.0
          %421 = vmatpush1.msra.mxu0 0.0
          %422 = vmatprep.subr.mxu0 0.0
          %423 = vmatpush1.msra.mxu0 0.0
          %424 = vmatprep.subr.mxu0 0.0
          %425 = vmatpush1.msra.mxu0 0.0
          %426 = vmatprep.subr.mxu0 0.0
          %427 = vmatpush1.msra.mxu0 0.0
          %428 = vmatprep.subr.mxu0 0.0
          %429 = vmatpush1.msra.mxu0 0.0
          %430 = vmatprep.subr.mxu0 0.0
          %431 = vmatpush1.msra.mxu0 0.0
          %432 = vmatprep.mubr.f32.mxu0 0.0
          %433 = vmatmul.mubr.f32.gmra.mrb[0].mxu0 %v366
          %v434 = vpop.f32.mrb[0].mxu0
          %v435 = vadd.f32 0.0, %v434
          %v436 = vpop.f32.mrb[0].mxu0
          %437 = vdwg.mxu0
          %v438 = vmax.f32 %v435, 0.0
          %vm439 = vcmask 15360
          %v440 = vsel %vm439, %v438, 0.0
          %441 = vadd.xlane.f32.xlu0 %v440
          %v442 = vpop.xlane.xlu0 %441
          %v443 = vld [vmem:[%s2] sm:$0xff]
          %v444 = vld [vmem:[%s2 + $0x8] sm:$0xff]
          %v445 = vld [vmem:[%s2 + $0x10] sm:$0xff]
          %v446 = vld [vmem:[%s2 + $0x18] sm:$0xff]
          %vm447 = vcmask 64512
          %v449 = vsel %vm447, %v443, 0
          %v452 = vsel %vm447, %v444, 0
          %v455 = vsel %vm447, %v445, 0
          %v458 = vsel %vm447, %v446, 0
          %460 = vmatprep.subr.mxu0 0.0
          %461 = vmatpush1.msra.mxu0 %v442
          %462 = vmatprep.subr.mxu0 0.0
          %463 = vmatpush1.msra.mxu0 0.0
          %464 = vmatprep.subr.mxu0 0.0
          %465 = vmatpush1.msra.mxu0 0.0
          %466 = vmatprep.subr.mxu0 0.0
          %467 = vmatpush1.msra.mxu0 0.0
          %468 = vmatprep.subr.mxu0 0.0
          %469 = vmatpush1.msra.mxu0 0.0
          %470 = vmatprep.subr.mxu0 0.0
          %471 = vmatpush1.msra.mxu0 0.0
          %472 = vmatprep.subr.mxu0 0.0
          %473 = vmatpush1.msra.mxu0 0.0
          %474 = vmatprep.subr.mxu0 0.0
          %475 = vmatpush1.msra.mxu0 0.0
          %476 = vmatprep.subr.mxu0 0.0
          %477 = vmatpush1.msra.mxu0 0.0
          %478 = vmatprep.subr.mxu0 0.0
          %479 = vmatpush1.msra.mxu0 0.0
          %480 = vmatprep.subr.mxu0 0.0
          %481 = vmatpush1.msra.mxu0 0.0
          %482 = vmatprep.subr.mxu0 0.0
          %483 = vmatpush1.msra.mxu0 0.0
          %484 = vmatprep.subr.mxu0 0.0
          %485 = vmatpush1.msra.mxu0 0.0
          %486 = vmatprep.subr.mxu0 0.0
          %487 = vmatpush1.msra.mxu0 0.0
          %488 = vmatprep.subr.mxu0 0.0
          %489 = vmatpush1.msra.mxu0 0.0
          %490 = vmatprep.subr.mxu0 0.0
          %491 = vmatpush1.msra.mxu0 0.0
          %492 = vmatprep.subr.mxu0 0.0
          %493 = vmatpush1.msra.mxu0 0.0
          %494 = vmatprep.subr.mxu0 0.0
          %495 = vmatpush1.msra.mxu0 0.0
          %496 = vmatprep.subr.mxu0 0.0
          %497 = vmatpush1.msra.mxu0 0.0
          %498 = vmatprep.subr.mxu0 0.0
          %499 = vmatpush1.msra.mxu0 0.0
          %500 = vmatprep.subr.mxu0 0.0
          %501 = vmatpush1.msra.mxu0 0.0
          %502 = vmatprep.subr.mxu0 0.0
          %503 = vmatpush1.msra.mxu0 0.0
          %504 = vmatprep.subr.mxu0 0.0
          %505 = vmatpush1.msra.mxu0 0.0
          %506 = vmatprep.subr.mxu0 0.0
          %507 = vmatpush1.msra.mxu0 0.0
          %508 = vmatprep.subr.mxu0 0.0
          %509 = vmatpush1.msra.mxu0 0.0
          %510 = vmatprep.subr.mxu0 0.0
          %511 = vmatpush1.msra.mxu0 0.0
          %512 = vmatprep.subr.mxu0 0.0
          %513 = vmatpush1.msra.mxu0 0.0
          %514 = vmatprep.subr.mxu0 0.0
          %515 = vmatpush1.msra.mxu0 0.0
          %516 = vmatprep.subr.mxu0 0.0
          %517 = vmatpush1.msra.mxu0 0.0
          %518 = vmatprep.subr.mxu0 0.0
          %519 = vmatpush1.msra.mxu0 0.0
          %520 = vmatprep.subr.mxu0 0.0
          %521 = vmatpush1.msra.mxu0 0.0
          %522 = vmatprep.subr.mxu0 0.0
          %523 = vmatpush1.msra.mxu0 0.0
          %524 = vmatprep.mubr.f32.mxu0 0.0
          %525 = vmatmul.mubr.f32.gmra.mrb[0].mxu0 %v449
          %v526 = vpop.f32.mrb[0].mxu0
          %v527 = vadd.f32 0.0, %v526
          %v528 = vpop.f32.mrb[0].mxu0
          %529 = vmatprep.mubr.f32.mxu0 0.0
          %530 = vmatmul.mubr.f32.gmra.mrb[0].mxu0 %v452
          %v531 = vpop.f32.mrb[0].mxu0
          %v532 = vadd.f32 0.0, %v531
          %v533 = vpop.f32.mrb[0].mxu0
          %534 = vmatprep.mubr.f32.mxu0 0.0
          %535 = vmatmul.mubr.f32.gmra.mrb[0].mxu0 %v455
          %v536 = vpop.f32.mrb[0].mxu0
          %v537 = vadd.f32 0.0, %v536
          %v538 = vpop.f32.mrb[0].mxu0
          %539 = vmatprep.mubr.f32.mxu0 0.0
          %540 = vmatmul.mubr.f32.gmra.mrb[0].mxu0 %v458
          %v541 = vpop.f32.mrb[0].mxu0
          %v542 = vadd.f32 0.0, %v541
          %v543 = vpop.f32.mrb[0].mxu0
          %544 = vdwg.mxu0
          %v545 = vxor.u32 %v527, 2147483648
          %v546 = vxor.u32 %v532, 2147483648
          %v547 = vxor.u32 %v537, 2147483648
          %v548 = vxor.u32 %v542, 2147483648
          %v549 = vmul.f32 %v545, 1.442695
          %v550 = vpow.pop %v549
          %v551 = vmul.f32 %v546, 1.442695
          %v552 = vpow.pop %v551
          %v553 = vmul.f32 %v547, 1.442695
          %v554 = vpow.pop %v553
          %v555 = vmul.f32 %v548, 1.442695
          %v556 = vpow.pop %v555
          %v557 = vadd.f32 %v550, 1.0
          %v558 = vadd.f32 %v552, 1.0
          %v559 = vadd.f32 %v554, 1.0
          %v560 = vadd.f32 %v556, 1.0
          %v561 = vrcp.pop %v557
          %v562 = vmul.f32 1.0, %v561
          %v563 = vrcp.pop %v558
          %v564 = vmul.f32 1.0, %v563
          %v565 = vrcp.pop %v559
          %v566 = vmul.f32 1.0, %v565
          %v567 = vrcp.pop %v560
          %v568 = vmul.f32 1.0, %v567
          %vm569 = vcmask 7168
          %v570 = vsel %vm569, %v562, -inf
          %v571 = vsel %vm569, %v564, -inf
          %v572 = vsel %vm569, %v566, -inf
          %v573 = vsel %vm569, %v568, -inf
          %v574 = vmax.f32 %v570, %v571
          %v575 = vmax.f32 %v572, %v573
          %v576 = vmax.f32 %v574, %v575
          %v577 = vrot.slane %v576, 4
          %v578 = vmax.f32 %v576, %v577
          %v579 = vrot.slane %v578, 2
          %v580 = vmax.f32 %v578, %v579
          %v581 = vrot.slane %v580, 1
          %v582 = vmax.f32 %v580, %v581
          %v583 = vsel %vm569, %v562, 0.0
          %v584 = vsel %vm569, %v564, 0.0
          %v585 = vadd.f32 %v583, %v584
          %v586 = vsel %vm569, %v566, 0.0
          %v587 = vadd.f32 %v585, %v586
          %v588 = vsel %vm569, %v568, 0.0
          %v589 = vadd.f32 %v587, %v588
          %v590 = vrot.slane %v589, 4
          %v591 = vadd.f32 %v589, %v590
          %v592 = vrot.slane %v591, 2
          %v593 = vadd.f32 %v591, %v592
          %v594 = vrot.slane %v593, 1
          %v595 = vadd.f32 %v593, %v594
          %v596 = vmul.f32 %v595, 0.03125
          %s597 = sld [smem:[#allocation7]]
          %v598 = vstv %s597
          %v599 = vmul.f32 %v598, %v582
          %s600 = sld [smem:[#allocation7 + $0x1]]
          %v601 = vstv %s600
          %v602 = vmul.f32 %v601, %v596
          %v603 = vadd.f32 %v599, %v602
          %v604 = vmul.f32 %v603, 0.999995
          %v605 = vxor.u32 %v604, 2147483648
          %v606 = vmul.f32 %v605, 1.442695
          %v607 = vpow.pop %v606
          %v608 = vadd.f32 %v607, 1.0
          %v609 = vrcp.pop %v608
          %v610 = vmul.f32 1.0, %v609
          %v611 = vmul.f32 %v562, %v610
          %v612 = vmul.f32 %v564, %v610
          %v613 = vmul.f32 %v566, %v610
          %v614 = vmul.f32 %v568, %v610
          %615 = vst.msk [vmem:[%s248] sm:$0xff] %vm569, %v611
          %616 = vst.msk [vmem:[%s248 + $0x8] sm:$0xff] %vm569, %v612
          %617 = vst.msk [vmem:[%s248 + $0x10] sm:$0xff] %vm569, %v613
          %618 = vst.msk [vmem:[%s248 + $0x18] sm:$0xff] %vm569, %v614
        $region52: #{tpu_custom_call.1} parent=35 // pred_fallthru
          _
        %p619 = scmp.lt.s32.totalorder %s23, 1
        %s620 = scalar_select %p619, %s23, 1
        %s621 = smul.addr %s620, 4
        %s622 = smul.addr %s621, 8
        %s623 = scalar_lea.vmem %s4, %s622
        // Predicated region
        $region53: #{tpu_custom_call.1} parent=35 // pred_check
          %p624 = pneg %p140
        $region54: #{tpu_custom_call.1} parent=35 // pred_check_branch
          %626 = sbr.rel (%p624) target = $region56
        $region55: #{tpu_custom_call.1} parent=35 // pred_region
          _
        $region56: #{tpu_custom_call.1} parent=35 // pred_fallthru
          _
      $region36: #{tpu_custom_call.1} parent=5 // pred_fallthru
        _
      %p627 = scmp.le.s32.totalorder 2, %s14
      // Predicated region
      $region57: #{tpu_custom_call.1} parent=5 // pred_check
        %p628 = pneg %p627
      $region58: #{tpu_custom_call.1} parent=5 // pred_check_branch
        %630 = sbr.rel (%p628) target = $region60
      $region59: #{tpu_custom_call.1} parent=5 // pred_region
        %s631 = ssub.s32 %s14, 2
        // Predicated region
        $region61: #{tpu_custom_call.1} parent=59 // pred_check
          %p632 = pneg %p146
        $region62: #{tpu_custom_call.1} parent=59 // pred_check_branch
          %634 = sbr.rel (%p632) target = $region64
        $region63: #{tpu_custom_call.1} parent=59 // pred_region
          %p635 = scmp.lt.s32.totalorder %s25, 1
          %s636 = scalar_select %p635, %s25, 1
          %s637 = smul.addr %s636, 4
          %s638 = smul.addr %s637, 8
          %s639 = scalar_lea.vmem %s4, %s638
        $region64: #{tpu_custom_call.1} parent=59 // pred_fallthru
          _
      $region60: #{tpu_custom_call.1} parent=5 // pred_fallthru
        _
    $region6: #{tpu_custom_call.1} parent=1 // loop_footer
      %s18 = sadd.s32 1, %s14
    $region7: #{tpu_custom_call.1} parent=1 // loop_footer_branch
      %13 = sbr.rel target = $region3
    $region8: #{tpu_custom_call.1} parent=1 // loop_exit
      _
    %640 = vsyncpa [#allocation5], 1
    %s641 = scalar_lea.sflag [#allocation5], 1
    %642 = vsyncpa %s641, 1
    %643 = vsyncpa [#allocation6], 1
    %s644 = scalar_lea.sflag [#allocation6], 1
    %645 = vsyncpa %s644, 1

</llo_original>
